<compile_context>
chip_gen: v7x
topology: tpu7x:2x2x1
jax: 0.10.0
libtpu: 0.0.40
codegen_flags: <defaults>
</compile_context>

<pallas_src>
import jax
import jax.numpy as jnp
from jax import lax
from jax.experimental import pallas as pl
from jax.experimental.pallas import tpu as pltpu


_DEC_CHUNK = 512   # lanes per decode store; multiple of 128 -> unmasked vst
_SUBLANE = 16      # bf16 sublane packing quantum


def _ae_kernel(x_ref, w_ref, o_ref):
    # x_ref: (tB, D) bf16   w_ref: (hidden, D) bf16   o_ref: (tB, D) out dtype
    x = x_ref[...]
    w = w_ref[...]
    # enc = x @ W.T without materializing W.T: contract x dim 1 with W dim 1.
    enc = lax.dot_general(
        x, w,
        dimension_numbers=(((1,), (1,)), ((), ())),
        preferred_element_type=jnp.float32,
    )                                              # (tB, hidden) f32 accum
    enc = enc.astype(jnp.bfloat16)                 # bf16 MXU operand for decode
    # dec = enc @ W (tied decoder), emitted in lane-dense chunks so the full
    # (tB, D) f32 temp is never live and stores overlap remaining matmuls.
    d = o_ref.shape[1]
    start = 0
    while start < d:                               # static loop: d is static
        width = min(_DEC_CHUNK, d - start)
        o_ref[:, start:start + width] = jnp.dot(
            enc, w_ref[:, start:start + width],
            preferred_element_type=jnp.float32,
        ).astype(o_ref.dtype)
        start += width


def _round_up(n, m):
    return ((n + m - 1) // m) * m


def _choose_row_tile(b_pad, d, hidden, out_itemsize, row_tile_cap):
    """Largest multiple-of-16 row tile fitting the VMEM budget, capped so that
    large batches give >= 2 grid steps (v7x megacore sharding)."""
    budget = 40 * 1024 * 1024                      # working budget < 48 MiB limit
    fixed = hidden * d * 2                         # single-buffered bf16 weight
    per_row = (2 * d * 2                           # bf16 x tile, double-buffered
               + 2 * d * out_itemsize              # output tile, double-buffered
               + hidden * 4                        # f32 enc temp
               + _DEC_CHUNK * 4)                   # f32 dec chunk temp
    vmem_rows = max((budget - fixed) // per_row, _SUBLANE)
    tb = min(row_tile_cap, int(vmem_rows))
    if b_pad >= 2 * _SUBLANE:
        # Ensure at least two grid steps so v7x can split the "parallel" batch
        # axis across both TensorCores (no effect on single-TC v5e / v6e).
        tb = min(tb, _round_up(pl.cdiv(b_pad, 2), _SUBLANE))
    tb = max(_SUBLANE, (tb // _SUBLANE) * _SUBLANE)
    return min(tb, b_pad)                          # both are multiples of 16


def linear_ae_forward(x, enc_weight, *, row_tile=512):
    """x: (B, C, H, W). enc_weight: (hidden, D) == nn.Linear(input, hidden).weight."""
    B = x.shape[0]
    D = int(x.shape[1] * x.shape[2] * x.shape[3])
    hidden = enc_weight.shape[0]
    assert enc_weight.shape == (hidden, D)

    out_dtype = x.dtype
    out_itemsize = jnp.dtype(out_dtype).itemsize

    # bf16 operands (the kernel accumulates in f32 on the MXU).
    x_flat = x.reshape(B, D).astype(jnp.bfloat16)
    w_bf16 = enc_weight.astype(jnp.bfloat16)

    # Pad the batch to the bf16 sublane quantum so every vreg / MXU row group
    # is fully packed. No-op when B is already a multiple of 16.
    B_pad = _round_up(B, _SUBLANE)
    if B_pad != B:
        x_flat = jnp.pad(x_flat, ((0, B_pad - B), (0, 0)))

    tB = _choose_row_tile(B_pad, D, hidden, out_itemsize, row_tile)
    grid = (pl.cdiv(B_pad, tB),)

    flops = 4 * B_pad * D * hidden     # 2*B*D*h (encode) + 2*B*h*D (decode)
    bytes_accessed = (x_flat.size * 2 + w_bf16.size * 2
                      + B_pad * D * out_itemsize)

    out_flat = pl.pallas_call(
        _ae_kernel,
        out_shape=jax.ShapeDtypeStruct((B_pad, D), out_dtype),
        grid=grid,
        in_specs=[
            pl.BlockSpec((tB, D), lambda i: (i, 0)),
            # Constant index_map -> weight stays VMEM-resident across all grid
            # steps; a single buffer is enough (saves hidden*D*2 bytes).
            pl.BlockSpec((hidden, D), lambda i: (0, 0),
                         pipeline_mode=pl.Buffered(1)),
        ],
        out_specs=pl.BlockSpec((tB, D), lambda i: (i, 0)),
        compiler_params=pltpu.CompilerParams(
            dimension_semantics=("parallel",),
            # Above v5e's 16 MiB default scoped VMEM, below v7x's 64 MiB
            # physical; tB is sized against a 40 MiB working budget.
            vmem_limit_bytes=48 * 1024 * 1024,
        ),
        cost_estimate=pl.CostEstimate(
            flops=flops, transcendentals=0, bytes_accessed=bytes_accessed
        ),
    )(x_flat, w_bf16)

    if B_pad != B:
        out_flat = out_flat[:B]
    return out_flat.reshape(x.shape)


def make_orthogonal_encoder_weight(key, hidden_dim, input_dim):
    """Deterministic analogue of nn.init.orthogonal_ on a (hidden, input) weight.

    For hidden <= input, orthogonal_ gives orthonormal rows; build via QR of a
    (input, hidden) Gaussian -> Q has orthonormal columns -> Q.T has
    orthonormal rows.
    """
    a = jax.random.normal(key, (input_dim, hidden_dim), dtype=jnp.float32)
    q, r = jnp.linalg.qr(a)
    q = q * jnp.sign(jnp.diag(r))[None, :]  # sign-fix for determinism
    return q.T  # (hidden, input)


if __name__ == "__main__":
    key = jax.random.PRNGKey(0)
    k_w, k_x = jax.random.split(key)

    # Small shapes consistent with the module: batch=2, channels=4, spatial=16.
    B, C, H, W = 2, 4, 16, 16
    input_dim = C * H * W          # 1024
    # NOTE: hidden < 128 caps MXU column utilization; irrelevant here because
    # the kernel is memory-bound. Use a multiple of 128 if hidden is tunable.
    hidden_dim = 32

    enc_weight = make_orthogonal_encoder_weight(k_w, hidden_dim, input_dim)
    x = jax.random.normal(k_x, (B, C, H, W), dtype=jnp.float32)

    out = linear_ae_forward(x, enc_weight)
    out = jax.block_until_ready(out)

    # Pure-JAX f32 reference of the same forward pass; tolerance relaxed for
    # the bf16 operand cast inside the kernel.
    x_flat = x.reshape(B, -1)
    ref = (x_flat @ enc_weight.T) @ enc_weight
    ref = ref.reshape(x.shape)

    assert out.shape == x.shape and out.dtype == x.dtype
    assert jnp.allclose(out, ref, atol=3e-2, rtol=3e-2), "mismatch vs reference"

    print("KERNEL_OK")
</pallas_src>

<mosaic_0001>
module attributes {stable_mosaic.version = 11 : i64} {
  func.func @_ae_kernel(%arg0: i32, %arg1: memref<16x1024xbf16, #tpu.memory_space<vmem>>, %arg2: memref<32x1024xbf16, #tpu.memory_space<vmem>>, %arg3: memref<16x1024xf32, #tpu.memory_space<vmem>>) attributes {dimension_semantics = [#tpu.dimension_semantics<parallel>], iteration_bounds = array<i64: 1>, scalar_prefetch = 0 : i64, scratch_operands = 0 : i64, tpu.core_type = #tpu.core_type<tc>, window_params = [{transform_indices = @transform_0, window_bounds = array<i64: 16, 1024>}, {pipeline_mode = #tpu.pipeline_mode<synchronous>, transform_indices = @transform_1, window_bounds = array<i64: 32, 1024>}, {transform_indices = @transform_2, window_bounds = array<i64: 16, 1024>}]} {
    %c0 = arith.constant 0 : index
    %c0_0 = arith.constant 0 : index
    %0 = vector.load %arg1[%c0, %c0_0] : memref<16x1024xbf16, #tpu.memory_space<vmem>>, vector<16x1024xbf16>
    %c0_1 = arith.constant 0 : index
    %c0_2 = arith.constant 0 : index
    %1 = vector.load %arg2[%c0_1, %c0_2] : memref<32x1024xbf16, #tpu.memory_space<vmem>>, vector<32x1024xbf16>
    %cst = arith.constant dense<0.000000e+00> : vector<16x32xf32>
    %2 = tpu.matmul %0, %1, %cst {dimension_numbers = #tpu.dot_dimension_numbers<[1], [1], [0], [0], [0, 0, 1, 0], [], []>} : vector<16x1024xbf16>, vector<32x1024xbf16>, vector<16x32xf32> -> vector<16x32xf32>
    %3 = arith.truncf %2 : vector<16x32xf32> to vector<16x32xbf16>
    %c0_3 = arith.constant 0 : index
    %c0_4 = arith.constant 0 : index
    %4 = vector.load %arg2[%c0_3, %c0_4] : memref<32x1024xbf16, #tpu.memory_space<vmem>>, vector<32x512xbf16>
    %cst_5 = arith.constant dense<0.000000e+00> : vector<16x512xf32>
    %5 = tpu.matmul %3, %4, %cst_5 {dimension_numbers = #tpu.dot_dimension_numbers<[1], [0], [0], [1], [0, 0, 1, 1], [], []>} : vector<16x32xbf16>, vector<32x512xbf16>, vector<16x512xf32> -> vector<16x512xf32>
    %c0_6 = arith.constant 0 : index
    %c0_7 = arith.constant 0 : index
    %6 = vector.load %arg3[%c0_6, %c0_7] : memref<16x1024xf32, #tpu.memory_space<vmem>>, vector<16x512xf32>
    tpu.vector_store %arg3[%c0_6, %c0_7], %5 {strides = array<i32>} : memref<16x1024xf32, #tpu.memory_space<vmem>>, vector<16x512xf32>,
    %c0_8 = arith.constant 0 : index
    %c512 = arith.constant 512 : index
    %7 = vector.load %arg2[%c0_8, %c512] : memref<32x1024xbf16, #tpu.memory_space<vmem>>, vector<32x512xbf16>
    %cst_9 = arith.constant dense<0.000000e+00> : vector<16x512xf32>
    %8 = tpu.matmul %3, %7, %cst_9 {dimension_numbers = #tpu.dot_dimension_numbers<[1], [0], [0], [1], [0, 0, 1, 1], [], []>} : vector<16x32xbf16>, vector<32x512xbf16>, vector<16x512xf32> -> vector<16x512xf32>
    %c0_10 = arith.constant 0 : index
    %c512_11 = arith.constant 512 : index
    %9 = vector.load %arg3[%c0_10, %c512_11] : memref<16x1024xf32, #tpu.memory_space<vmem>>, vector<16x512xf32>
    tpu.vector_store %arg3[%c0_10, %c512_11], %8 {strides = array<i32>} : memref<16x1024xf32, #tpu.memory_space<vmem>>, vector<16x512xf32>,
    return
  }
  func.func @transform_0(%arg0: i32) -> (i32, i32) {
    %c0_i32 = arith.constant 0 : i32
    %c0_i32_0 = arith.constant 0 : i32
    return %arg0, %c0_i32 : i32, i32
  }
  func.func @transform_1(%arg0: i32) -> (i32, i32) {
    %c0_i32 = arith.constant 0 : i32
    %c0_i32_0 = arith.constant 0 : i32
    %c0_i32_1 = arith.constant 0 : i32
    return %c0_i32, %c0_i32_0 : i32, i32
  }
  func.func @transform_2(%arg0: i32) -> (i32, i32) {
    %c0_i32 = arith.constant 0 : i32
    %c0_i32_0 = arith.constant 0 : i32
    return %arg0, %c0_i32 : i32, i32
  }
}

</mosaic_0001>

<llo_original>
// kernel: tpu_custom_call.1
$region0: #{tpu_custom_call.1}
  #allocation0 [shape = 'u32[]', space=smem, size = 0x4, offset = 0x4, fixed_abs, tag = 'smem constant byte address 0x4 - core index']
  #allocation1 [shape = 'u32[144,128]{1,0:T(1,128)}', space=vmem, size = 0x12000, scoped, tag = 'internal scratch']
  %s0 = inlined_call_operand.hbm [shape: bf16[16,1024], index: 0, kind: input, shape index: {}]
  %s1 = inlined_call_operand.hbm [shape: bf16[32,1024], index: 1, kind: input, shape index: {}]
  %s2 = inlined_call_operand.hbm [shape: f32[16,1024], index: 2, kind: output, shape index: {}]
  %s3 = sld [smem:[#allocation0]]
  $region26: #{tpu_custom_call.1} parent=0
    _
  %s5 = ssub.s32 1, %s3
  %s6 = scalar_select 0, %s5, %s3
  $region1: #{tpu_custom_call.1} parent=0
    #allocation2 [shape = 'u8[32768]{0}', space=vmem, size = 0x8000, scoped, tag = 'input window, operand 0, single buffered']
    #allocation3 [shape = 's32[1]{0}', space=sflag, size = 0x4, scoped, tag = 'scoped memory for tpu_custom_call.1']
    #allocation4 [shape = 's32[1]{0}', space=sflag, size = 0x4, scoped, tag = 'scoped memory for tpu_custom_call.1']
    #allocation5 [shape = 'u8[65536]{0}', space=vmem, size = 0x10000, scoped, tag = 'input window, operand 1, single buffered']
    #allocation6 [shape = 's32[1]{0}', space=sflag, size = 0x4, scoped, tag = 'scoped memory for tpu_custom_call.1']
    #allocation7 [shape = 'u8[65536]{0}', space=vmem, size = 0x10000, scoped, tag = 'output window, operand 0, single buffered']
    %7 = vsyncpa [#allocation3], 0
    %8 = vsyncpa [#allocation6], 0
    %9 = vsyncpa [#allocation4], 0
    // Predicated region
    $region2: #{tpu_custom_call.1} parent=1 // pred_check
      _
    $region3: #{tpu_custom_call.1} parent=1 // pred_check_branch
      %11 = sbr.rel (0) target = $region5
    $region4: #{tpu_custom_call.1} parent=1 // pred_region
      %s13 = ssub.s32 1024, 1024
      %14 = vsyncadd [#allocation3], %s13
      %s15 = sshll.u32 [#allocation2], 4
      %s16 = int_to_ptr.vmem [resolvable:$true] %s15
      %21 = dma.hbm_to_vmem [thread:$0]  %s0, 1024, %s16, [#allocation3], 512, 512, 32
    $region5: #{tpu_custom_call.1} parent=1 // pred_fallthru
      _
    // Predicated region
    $region6: #{tpu_custom_call.1} parent=1 // pred_check
      _
    $region7: #{tpu_custom_call.1} parent=1 // pred_check_branch
      %23 = sbr.rel (0) target = $region9
    $region8: #{tpu_custom_call.1} parent=1 // pred_region
      %s25 = ssub.s32 2048, 2048
      %26 = vsyncadd [#allocation6], %s25
      %s27 = sshll.u32 [#allocation5], 4
      %s28 = int_to_ptr.vmem [resolvable:$true] %s27
      %33 = dma.hbm_to_vmem [thread:$0]  %s1, 2048, %s28, [#allocation6], 512, 512, 32
    $region9: #{tpu_custom_call.1} parent=1 // pred_fallthru
      _
    // Predicated region
    $region10: #{tpu_custom_call.1} parent=1 // pred_check
      _
    $region11: #{tpu_custom_call.1} parent=1 // pred_check_branch
      %35 = sbr.rel (0) target = $region13
    $region12: #{tpu_custom_call.1} parent=1 // pred_region
      %36 = dma.done [#allocation3], 1024
    $region13: #{tpu_custom_call.1} parent=1 // pred_fallthru
      _
    // Predicated region
    $region14: #{tpu_custom_call.1} parent=1 // pred_check
      _
    $region15: #{tpu_custom_call.1} parent=1 // pred_check_branch
      %38 = sbr.rel (0) target = $region17
    $region16: #{tpu_custom_call.1} parent=1 // pred_region
      %39 = dma.done [#allocation6], 2048
    $region17: #{tpu_custom_call.1} parent=1 // pred_fallthru
      _
    %v41 = vld [vmem:[#allocation2] sm:$0xff]
    %v42 = vld [vmem:[#allocation2 + $0x8] sm:$0xff]
    %v43 = vld [vmem:[#allocation2 + $0x10] sm:$0xff]
    %v44 = vld [vmem:[#allocation2 + $0x18] sm:$0xff]
    %v45 = vld [vmem:[#allocation2 + $0x20] sm:$0xff]
    %v46 = vld [vmem:[#allocation2 + $0x28] sm:$0xff]
    %v47 = vld [vmem:[#allocation2 + $0x30] sm:$0xff]
    %v48 = vld [vmem:[#allocation2 + $0x38] sm:$0xff]
    %v49 = vld [vmem:[#allocation5] sm:$0xff]
    %v50 = vld [vmem:[#allocation5 + $0x8] sm:$0xff]
    %v51 = vld [vmem:[#allocation5 + $0x10] sm:$0xff]
    %v52 = vld [vmem:[#allocation5 + $0x18] sm:$0xff]
    %v53 = vld [vmem:[#allocation5 + $0x20] sm:$0xff]
    %v54 = vld [vmem:[#allocation5 + $0x28] sm:$0xff]
    %v55 = vld [vmem:[#allocation5 + $0x30] sm:$0xff]
    %v56 = vld [vmem:[#allocation5 + $0x38] sm:$0xff]
    %v57 = vld [vmem:[#allocation5 + $0x40] sm:$0xff]
    %v58 = vld [vmem:[#allocation5 + $0x48] sm:$0xff]
    %v59 = vld [vmem:[#allocation5 + $0x50] sm:$0xff]
    %v60 = vld [vmem:[#allocation5 + $0x58] sm:$0xff]
    %v61 = vld [vmem:[#allocation5 + $0x60] sm:$0xff]
    %v62 = vld [vmem:[#allocation5 + $0x68] sm:$0xff]
    %v63 = vld [vmem:[#allocation5 + $0x70] sm:$0xff]
    %v64 = vld [vmem:[#allocation5 + $0x78] sm:$0xff]
    %v73 = vunpack.c.l.b16 %v41
    %v74 = vunpack.c.h.b16 %v41
    %v75 = vunpack.c.l.b16 %v42
    %v76 = vunpack.c.h.b16 %v42
    %v77 = vunpack.c.l.b16 %v43
    %v78 = vunpack.c.h.b16 %v43
    %v79 = vunpack.c.l.b16 %v44
    %v80 = vunpack.c.h.b16 %v44
    %v81 = vunpack.c.l.b16 %v45
    %v82 = vunpack.c.h.b16 %v45
    %v83 = vunpack.c.l.b16 %v46
    %v84 = vunpack.c.h.b16 %v46
    %v85 = vunpack.c.l.b16 %v47
    %v86 = vunpack.c.h.b16 %v47
    %v87 = vunpack.c.l.b16 %v48
    %v88 = vunpack.c.h.b16 %v48
    %v89 = vpack.c.b16 %v81, %v73
    %v90 = vpack.c.b16 %v82, %v74
    %v91 = vpack.c.b16 %v83, %v75
    %v92 = vpack.c.b16 %v84, %v76
    %v93 = vpack.c.b16 %v85, %v77
    %v94 = vpack.c.b16 %v86, %v78
    %v95 = vpack.c.b16 %v87, %v79
    %v96 = vpack.c.b16 %v88, %v80
    %v121 = vunpack.c.l.b16 %v49
    %v122 = vunpack.c.h.b16 %v49
    %v123 = vunpack.c.l.b16 %v50
    %v124 = vunpack.c.h.b16 %v50
    %v125 = vunpack.c.l.b16 %v51
    %v126 = vunpack.c.h.b16 %v51
    %v127 = vunpack.c.l.b16 %v52
    %v128 = vunpack.c.h.b16 %v52
    %v129 = vunpack.c.l.b16 %v53
    %v130 = vunpack.c.h.b16 %v53
    %v131 = vunpack.c.l.b16 %v54
    %v132 = vunpack.c.h.b16 %v54
    %v133 = vunpack.c.l.b16 %v55
    %v134 = vunpack.c.h.b16 %v55
    %v135 = vunpack.c.l.b16 %v56
    %v136 = vunpack.c.h.b16 %v56
    %v137 = vunpack.c.l.b16 %v57
    %v138 = vunpack.c.h.b16 %v57
    %v139 = vunpack.c.l.b16 %v58
    %v140 = vunpack.c.h.b16 %v58
    %v141 = vunpack.c.l.b16 %v59
    %v142 = vunpack.c.h.b16 %v59
    %v143 = vunpack.c.l.b16 %v60
    %v144 = vunpack.c.h.b16 %v60
    %v145 = vunpack.c.l.b16 %v61
    %v146 = vunpack.c.h.b16 %v61
    %v147 = vunpack.c.l.b16 %v62
    %v148 = vunpack.c.h.b16 %v62
    %v149 = vunpack.c.l.b16 %v63
    %v150 = vunpack.c.h.b16 %v63
    %v151 = vunpack.c.l.b16 %v64
    %v152 = vunpack.c.h.b16 %v64
    %v153 = vpack.c.b16 %v129, %v121
    %v154 = vpack.c.b16 %v130, %v122
    %v155 = vpack.c.b16 %v131, %v123
    %v156 = vpack.c.b16 %v132, %v124
    %v157 = vpack.c.b16 %v133, %v125
    %v158 = vpack.c.b16 %v134, %v126
    %v159 = vpack.c.b16 %v135, %v127
    %v160 = vpack.c.b16 %v136, %v128
    %v161 = vpack.c.b16 %v145, %v137
    %v162 = vpack.c.b16 %v146, %v138
    %v163 = vpack.c.b16 %v147, %v139
    %v164 = vpack.c.b16 %v148, %v140
    %v165 = vpack.c.b16 %v149, %v141
    %v166 = vpack.c.b16 %v150, %v142
    %v167 = vpack.c.b16 %v151, %v143
    %v168 = vpack.c.b16 %v152, %v144
    %185 = vmatprep.subr.bf16.mxu0 %v154
    %186 = vmatpush1.bf16.xpose.msra.mxu0 %v153
    %187 = vmatprep.subr.bf16.mxu0 %v162
    %188 = vmatpush1.bf16.xpose.msra.mxu0 %v161
    %189 = vmatprep.subr.bf16.mxu0 0
    %190 = vmatpush1.bf16.xpose.msra.mxu0 0
    %191 = vmatprep.subr.bf16.mxu0 0
    %192 = vmatpush1.bf16.xpose.msra.mxu0 0
    %193 = vmatprep.subr.bf16.mxu0 0
    %194 = vmatpush1.bf16.xpose.msra.mxu0 0
    %195 = vmatprep.subr.bf16.mxu0 0
    %196 = vmatpush1.bf16.xpose.msra.mxu0 0
    %197 = vmatprep.subr.bf16.mxu0 0
    %198 = vmatpush1.bf16.xpose.msra.mxu0 0
    %199 = vmatprep.subr.bf16.mxu0 0
    %200 = vmatpush1.bf16.xpose.msra.mxu0 0
    %201 = vmatprep.subr.bf16.mxu0 0
    %202 = vmatpush1.bf16.xpose.msra.mxu0 0
    %203 = vmatprep.subr.bf16.mxu0 0
    %204 = vmatpush1.bf16.xpose.msra.mxu0 0
    %205 = vmatprep.subr.bf16.mxu0 0
    %206 = vmatpush1.bf16.xpose.msra.mxu0 0
    %207 = vmatprep.subr.bf16.mxu0 0
    %208 = vmatpush1.bf16.xpose.msra.mxu0 0
    %209 = vmatprep.subr.bf16.mxu0 0
    %210 = vmatpush1.bf16.xpose.msra.mxu0 0
    %211 = vmatprep.subr.bf16.mxu0 0
    %212 = vmatpush1.bf16.xpose.msra.mxu0 0
    %213 = vmatprep.subr.bf16.mxu0 0
    %214 = vmatpush1.bf16.xpose.msra.mxu0 0
    %215 = vmatprep.subr.bf16.mxu0 0
    %216 = vmatpush1.bf16.xpose.msra.mxu0 0
    %217 = vmatprep.mubr.bf16.mxu0 %v90
    %218 = vmatmul.mubr.bf16.gmra.mrb[0].mxu0 %v89
    %v219 = vpop.f32.mrb[0].mxu0
    %v220 = vadd.f32 0.0, %v219
    %v221 = vpop.f32.mrb[0].mxu0
    %v222 = vpop.f32.mrb[0].mxu0
    %v223 = vadd.f32 0.0, %v222
    %v224 = vpop.f32.mrb[0].mxu0
    %225 = vdwg.mxu0
    %226 = vmatprep.subr.bf16.mxu0 %v156
    %227 = vmatpush1.bf16.xpose.msra.mxu0 %v155
    %228 = vmatprep.subr.bf16.mxu0 %v164
    %229 = vmatpush1.bf16.xpose.msra.mxu0 %v163
    %230 = vmatprep.subr.bf16.mxu0 0
    %231 = vmatpush1.bf16.xpose.msra.mxu0 0
    %232 = vmatprep.subr.bf16.mxu0 0
    %233 = vmatpush1.bf16.xpose.msra.mxu0 0
    %234 = vmatprep.subr.bf16.mxu0 0
    %235 = vmatpush1.bf16.xpose.msra.mxu0 0
    %236 = vmatprep.subr.bf16.mxu0 0
    %237 = vmatpush1.bf16.xpose.msra.mxu0 0
    %238 = vmatprep.subr.bf16.mxu0 0
    %239 = vmatpush1.bf16.xpose.msra.mxu0 0
    %240 = vmatprep.subr.bf16.mxu0 0
    %241 = vmatpush1.bf16.xpose.msra.mxu0 0
    %242 = vmatprep.subr.bf16.mxu0 0
    %243 = vmatpush1.bf16.xpose.msra.mxu0 0
    %244 = vmatprep.subr.bf16.mxu0 0
    %245 = vmatpush1.bf16.xpose.msra.mxu0 0
    %246 = vmatprep.subr.bf16.mxu0 0
    %247 = vmatpush1.bf16.xpose.msra.mxu0 0
    %248 = vmatprep.subr.bf16.mxu0 0
    %249 = vmatpush1.bf16.xpose.msra.mxu0 0
    %250 = vmatprep.subr.bf16.mxu0 0
    %251 = vmatpush1.bf16.xpose.msra.mxu0 0
    %252 = vmatprep.subr.bf16.mxu0 0
    %253 = vmatpush1.bf16.xpose.msra.mxu0 0
    %254 = vmatprep.subr.bf16.mxu0 0
    %255 = vmatpush1.bf16.xpose.msra.mxu0 0
    %256 = vmatprep.subr.bf16.mxu0 0
    %257 = vmatpush1.bf16.xpose.msra.mxu0 0
    %258 = vmatprep.mubr.bf16.mxu0 %v92
    %259 = vmatmul.mubr.bf16.gmra.mrb[0].mxu0 %v91
    %v260 = vpop.f32.mrb[0].mxu0
    %v261 = vadd.f32 %v220, %v260
    %v262 = vpop.f32.mrb[0].mxu0
    %v263 = vpop.f32.mrb[0].mxu0
    %v264 = vadd.f32 %v223, %v263
    %v265 = vpop.f32.mrb[0].mxu0
    %266 = vdwg.mxu0
    %267 = vmatprep.subr.bf16.mxu0 %v158
    %268 = vmatpush1.bf16.xpose.msra.mxu0 %v157
    %269 = vmatprep.subr.bf16.mxu0 %v166
    %270 = vmatpush1.bf16.xpose.msra.mxu0 %v165
    %271 = vmatprep.subr.bf16.mxu0 0
    %272 = vmatpush1.bf16.xpose.msra.mxu0 0
    %273 = vmatprep.subr.bf16.mxu0 0
    %274 = vmatpush1.bf16.xpose.msra.mxu0 0
    %275 = vmatprep.subr.bf16.mxu0 0
    %276 = vmatpush1.bf16.xpose.msra.mxu0 0
    %277 = vmatprep.subr.bf16.mxu0 0
    %278 = vmatpush1.bf16.xpose.msra.mxu0 0
    %279 = vmatprep.subr.bf16.mxu0 0
    %280 = vmatpush1.bf16.xpose.msra.mxu0 0
    %281 = vmatprep.subr.bf16.mxu0 0
    %282 = vmatpush1.bf16.xpose.msra.mxu0 0
    %283 = vmatprep.subr.bf16.mxu0 0
    %284 = vmatpush1.bf16.xpose.msra.mxu0 0
    %285 = vmatprep.subr.bf16.mxu0 0
    %286 = vmatpush1.bf16.xpose.msra.mxu0 0
    %287 = vmatprep.subr.bf16.mxu0 0
    %288 = vmatpush1.bf16.xpose.msra.mxu0 0
    %289 = vmatprep.subr.bf16.mxu0 0
    %290 = vmatpush1.bf16.xpose.msra.mxu0 0
    %291 = vmatprep.subr.bf16.mxu0 0
    %292 = vmatpush1.bf16.xpose.msra.mxu0 0
    %293 = vmatprep.subr.bf16.mxu0 0
    %294 = vmatpush1.bf16.xpose.msra.mxu0 0
    %295 = vmatprep.subr.bf16.mxu0 0
    %296 = vmatpush1.bf16.xpose.msra.mxu0 0
    %297 = vmatprep.subr.bf16.mxu0 0
    %298 = vmatpush1.bf16.xpose.msra.mxu0 0
    %299 = vmatprep.mubr.bf16.mxu0 %v94
    %300 = vmatmul.mubr.bf16.gmra.mrb[0].mxu0 %v93
    %v301 = vpop.f32.mrb[0].mxu0
    %v302 = vadd.f32 %v261, %v301
    %v303 = vpop.f32.mrb[0].mxu0
    %v304 = vpop.f32.mrb[0].mxu0
    %v305 = vadd.f32 %v264, %v304
    %v306 = vpop.f32.mrb[0].mxu0
    %307 = vdwg.mxu0
    %308 = vmatprep.subr.bf16.mxu0 %v160
    %309 = vmatpush1.bf16.xpose.msra.mxu0 %v159
    %310 = vmatprep.subr.bf16.mxu0 %v168
    %311 = vmatpush1.bf16.xpose.msra.mxu0 %v167
    %312 = vmatprep.subr.bf16.mxu0 0
    %313 = vmatpush1.bf16.xpose.msra.mxu0 0
    %314 = vmatprep.subr.bf16.mxu0 0
    %315 = vmatpush1.bf16.xpose.msra.mxu0 0
    %316 = vmatprep.subr.bf16.mxu0 0
    %317 = vmatpush1.bf16.xpose.msra.mxu0 0
    %318 = vmatprep.subr.bf16.mxu0 0
    %319 = vmatpush1.bf16.xpose.msra.mxu0 0
    %320 = vmatprep.subr.bf16.mxu0 0
    %321 = vmatpush1.bf16.xpose.msra.mxu0 0
    %322 = vmatprep.subr.bf16.mxu0 0
    %323 = vmatpush1.bf16.xpose.msra.mxu0 0
    %324 = vmatprep.subr.bf16.mxu0 0
    %325 = vmatpush1.bf16.xpose.msra.mxu0 0
    %326 = vmatprep.subr.bf16.mxu0 0
    %327 = vmatpush1.bf16.xpose.msra.mxu0 0
    %328 = vmatprep.subr.bf16.mxu0 0
    %329 = vmatpush1.bf16.xpose.msra.mxu0 0
    %330 = vmatprep.subr.bf16.mxu0 0
    %331 = vmatpush1.bf16.xpose.msra.mxu0 0
    %332 = vmatprep.subr.bf16.mxu0 0
    %333 = vmatpush1.bf16.xpose.msra.mxu0 0
    %334 = vmatprep.subr.bf16.mxu0 0
    %335 = vmatpush1.bf16.xpose.msra.mxu0 0
    %336 = vmatprep.subr.bf16.mxu0 0
    %337 = vmatpush1.bf16.xpose.msra.mxu0 0
    %338 = vmatprep.subr.bf16.mxu0 0
    %339 = vmatpush1.bf16.xpose.msra.mxu0 0
    %340 = vmatprep.mubr.bf16.mxu0 %v96
    %341 = vmatmul.mubr.bf16.gmra.mrb[0].mxu0 %v95
    %v342 = vpop.f32.mrb[0].mxu0
    %v343 = vadd.f32 %v302, %v342
    %v344 = vpop.f32.mrb[0].mxu0
    %v345 = vpop.f32.mrb[0].mxu0
    %v346 = vadd.f32 %v305, %v345
    %v347 = vpop.f32.mrb[0].mxu0
    %348 = vdwg.mxu0
    %v349 = vpack.c.bf16 %v346, %v343
    %v350 = vld [vmem:[#allocation5] sm:$0xff]
    %v351 = vld [vmem:[#allocation5 + $0x8] sm:$0xff]
    %v352 = vld [vmem:[#allocation5 + $0x20] sm:$0xff]
    %v353 = vld [vmem:[#allocation5 + $0x28] sm:$0xff]
    %v354 = vld [vmem:[#allocation5 + $0x40] sm:$0xff]
    %v355 = vld [vmem:[#allocation5 + $0x48] sm:$0xff]
    %v356 = vld [vmem:[#allocation5 + $0x60] sm:$0xff]
    %v357 = vld [vmem:[#allocation5 + $0x68] sm:$0xff]
    %v366 = vunpack.c.l.b16 %v350
    %v367 = vunpack.c.h.b16 %v350
    %v368 = vunpack.c.l.b16 %v351
    %v369 = vunpack.c.h.b16 %v351
    %v370 = vunpack.c.l.b16 %v352
    %v371 = vunpack.c.h.b16 %v352
    %v372 = vunpack.c.l.b16 %v353
    %v373 = vunpack.c.h.b16 %v353
    %v374 = vunpack.c.l.b16 %v354
    %v375 = vunpack.c.h.b16 %v354
    %v376 = vunpack.c.l.b16 %v355
    %v377 = vunpack.c.h.b16 %v355
    %v378 = vunpack.c.l.b16 %v356
    %v379 = vunpack.c.h.b16 %v356
    %v380 = vunpack.c.l.b16 %v357
    %v381 = vunpack.c.h.b16 %v357
    %v382 = vpack.c.b16 %v370, %v366
    %v383 = vpack.c.b16 %v371, %v367
    %v384 = vpack.c.b16 %v372, %v368
    %v385 = vpack.c.b16 %v373, %v369
    %v386 = vpack.c.b16 %v378, %v374
    %v387 = vpack.c.b16 %v379, %v375
    %v388 = vpack.c.b16 %v380, %v376
    %v389 = vpack.c.b16 %v381, %v377
    %vm398 = vcmask 261120
    %v400 = vsel %vm398, %v349, 0
    %402 = vmatprep.subr.bf16.mxu0 %v383
    %403 = vmatpush1.bf16.msra.mxu0 %v382
    %404 = vmatprep.subr.bf16.mxu0 %v387
    %405 = vmatpush1.bf16.msra.mxu0 %v386
    %406 = vmatprep.subr.bf16.mxu0 0
    %407 = vmatpush1.bf16.msra.mxu0 0
    %408 = vmatprep.subr.bf16.mxu0 0
    %409 = vmatpush1.bf16.msra.mxu0 0
    %410 = vmatprep.subr.bf16.mxu0 0
    %411 = vmatpush1.bf16.msra.mxu0 0
    %412 = vmatprep.subr.bf16.mxu0 0
    %413 = vmatpush1.bf16.msra.mxu0 0
    %414 = vmatprep.subr.bf16.mxu0 0
    %415 = vmatpush1.bf16.msra.mxu0 0
    %416 = vmatprep.subr.bf16.mxu0 0
    %417 = vmatpush1.bf16.msra.mxu0 0
    %418 = vmatprep.subr.bf16.mxu0 0
    %419 = vmatpush1.bf16.msra.mxu0 0
    %420 = vmatprep.subr.bf16.mxu0 0
    %421 = vmatpush1.bf16.msra.mxu0 0
    %422 = vmatprep.subr.bf16.mxu0 0
    %423 = vmatpush1.bf16.msra.mxu0 0
    %424 = vmatprep.subr.bf16.mxu0 0
    %425 = vmatpush1.bf16.msra.mxu0 0
    %426 = vmatprep.subr.bf16.mxu0 0
    %427 = vmatpush1.bf16.msra.mxu0 0
    %428 = vmatprep.subr.bf16.mxu0 0
    %429 = vmatpush1.bf16.msra.mxu0 0
    %430 = vmatprep.subr.bf16.mxu0 0
    %431 = vmatpush1.bf16.msra.mxu0 0
    %432 = vmatprep.subr.bf16.mxu0 0
    %433 = vmatpush1.bf16.msra.mxu0 0
    %434 = vmatprep.mubr.bf16.mxu0 0
    %435 = vmatmul.mubr.bf16.gmra.mrb[0].mxu0 %v400
    %v436 = vpop.f32.mrb[0].mxu0
    %v437 = vadd.f32 0.0, %v436
    %v438 = vpop.f32.mrb[0].mxu0
    %v439 = vadd.f32 0.0, %v438
    %v440 = vpop.f32.mrb[0].mxu0
    %v441 = vadd.f32 0.0, %v440
    %v442 = vpop.f32.mrb[0].mxu0
    %v443 = vadd.f32 0.0, %v442
    %444 = vdwg.mxu0
    %445 = vmatprep.subr.bf16.mxu0 %v385
    %446 = vmatpush1.bf16.msra.mxu0 %v384
    %447 = vmatprep.subr.bf16.mxu0 %v389
    %448 = vmatpush1.bf16.msra.mxu0 %v388
    %449 = vmatprep.subr.bf16.mxu0 0
    %450 = vmatpush1.bf16.msra.mxu0 0
    %451 = vmatprep.subr.bf16.mxu0 0
    %452 = vmatpush1.bf16.msra.mxu0 0
    %453 = vmatprep.subr.bf16.mxu0 0
    %454 = vmatpush1.bf16.msra.mxu0 0
    %455 = vmatprep.subr.bf16.mxu0 0
    %456 = vmatpush1.bf16.msra.mxu0 0
    %457 = vmatprep.subr.bf16.mxu0 0
    %458 = vmatpush1.bf16.msra.mxu0 0
    %459 = vmatprep.subr.bf16.mxu0 0
    %460 = vmatpush1.bf16.msra.mxu0 0
    %461 = vmatprep.subr.bf16.mxu0 0
    %462 = vmatpush1.bf16.msra.mxu0 0
    %463 = vmatprep.subr.bf16.mxu0 0
    %464 = vmatpush1.bf16.msra.mxu0 0
    %465 = vmatprep.subr.bf16.mxu0 0
    %466 = vmatpush1.bf16.msra.mxu0 0
    %467 = vmatprep.subr.bf16.mxu0 0
    %468 = vmatpush1.bf16.msra.mxu0 0
    %469 = vmatprep.subr.bf16.mxu0 0
    %470 = vmatpush1.bf16.msra.mxu0 0
    %471 = vmatprep.subr.bf16.mxu0 0
    %472 = vmatpush1.bf16.msra.mxu0 0
    %473 = vmatprep.subr.bf16.mxu0 0
    %474 = vmatpush1.bf16.msra.mxu0 0
    %475 = vmatprep.subr.bf16.mxu0 0
    %476 = vmatpush1.bf16.msra.mxu0 0
    %477 = vmatprep.mubr.bf16.mxu0 0
    %478 = vmatmul.mubr.bf16.gmra.mrb[0].mxu0 %v400
    %v479 = vpop.f32.mrb[0].mxu0
    %v480 = vadd.f32 0.0, %v479
    %v481 = vpop.f32.mrb[0].mxu0
    %v482 = vadd.f32 0.0, %v481
    %v483 = vpop.f32.mrb[0].mxu0
    %v484 = vadd.f32 0.0, %v483
    %v485 = vpop.f32.mrb[0].mxu0
    %v486 = vadd.f32 0.0, %v485
    %487 = vdwg.mxu0
    %488 = vst [vmem:[#allocation7] sm:$0xff] %v437
    %489 = vst [vmem:[#allocation7 + $0x8] sm:$0xff] %v439
    %490 = vst [vmem:[#allocation7 + $0x10] sm:$0xff] %v480
    %491 = vst [vmem:[#allocation7 + $0x18] sm:$0xff] %v482
    %492 = vst [vmem:[#allocation7 + $0x40] sm:$0xff] %v441
    %493 = vst [vmem:[#allocation7 + $0x48] sm:$0xff] %v443
    %494 = vst [vmem:[#allocation7 + $0x50] sm:$0xff] %v484
    %495 = vst [vmem:[#allocation7 + $0x58] sm:$0xff] %v486
    %v496 = vld [vmem:[#allocation5 + $0x10] sm:$0xff]
    %v497 = vld [vmem:[#allocation5 + $0x18] sm:$0xff]
    %v498 = vld [vmem:[#allocation5 + $0x30] sm:$0xff]
    %v499 = vld [vmem:[#allocation5 + $0x38] sm:$0xff]
    %v500 = vld [vmem:[#allocation5 + $0x50] sm:$0xff]
    %v501 = vld [vmem:[#allocation5 + $0x58] sm:$0xff]
    %v502 = vld [vmem:[#allocation5 + $0x70] sm:$0xff]
    %v503 = vld [vmem:[#allocation5 + $0x78] sm:$0xff]
    %v512 = vunpack.c.l.b16 %v496
    %v513 = vunpack.c.h.b16 %v496
    %v514 = vunpack.c.l.b16 %v497
    %v515 = vunpack.c.h.b16 %v497
    %v516 = vunpack.c.l.b16 %v498
    %v517 = vunpack.c.h.b16 %v498
    %v518 = vunpack.c.l.b16 %v499
    %v519 = vunpack.c.h.b16 %v499
    %v520 = vunpack.c.l.b16 %v500
    %v521 = vunpack.c.h.b16 %v500
    %v522 = vunpack.c.l.b16 %v501
    %v523 = vunpack.c.h.b16 %v501
    %v524 = vunpack.c.l.b16 %v502
    %v525 = vunpack.c.h.b16 %v502
    %v526 = vunpack.c.l.b16 %v503
    %v527 = vunpack.c.h.b16 %v503
    %v528 = vpack.c.b16 %v516, %v512
    %v529 = vpack.c.b16 %v517, %v513
    %v530 = vpack.c.b16 %v518, %v514
    %v531 = vpack.c.b16 %v519, %v515
    %v532 = vpack.c.b16 %v524, %v520
    %v533 = vpack.c.b16 %v525, %v521
    %v534 = vpack.c.b16 %v526, %v522
    %v535 = vpack.c.b16 %v527, %v523
    %544 = vmatprep.subr.bf16.mxu0 %v529
    %545 = vmatpush1.bf16.msra.mxu0 %v528
    %546 = vmatprep.subr.bf16.mxu0 %v533
    %547 = vmatpush1.bf16.msra.mxu0 %v532
    %548 = vmatprep.subr.bf16.mxu0 0
    %549 = vmatpush1.bf16.msra.mxu0 0
    %550 = vmatprep.subr.bf16.mxu0 0
    %551 = vmatpush1.bf16.msra.mxu0 0
    %552 = vmatprep.subr.bf16.mxu0 0
    %553 = vmatpush1.bf16.msra.mxu0 0
    %554 = vmatprep.subr.bf16.mxu0 0
    %555 = vmatpush1.bf16.msra.mxu0 0
    %556 = vmatprep.subr.bf16.mxu0 0
    %557 = vmatpush1.bf16.msra.mxu0 0
    %558 = vmatprep.subr.bf16.mxu0 0
    %559 = vmatpush1.bf16.msra.mxu0 0
    %560 = vmatprep.subr.bf16.mxu0 0
    %561 = vmatpush1.bf16.msra.mxu0 0
    %562 = vmatprep.subr.bf16.mxu0 0
    %563 = vmatpush1.bf16.msra.mxu0 0
    %564 = vmatprep.subr.bf16.mxu0 0
    %565 = vmatpush1.bf16.msra.mxu0 0
    %566 = vmatprep.subr.bf16.mxu0 0
    %567 = vmatpush1.bf16.msra.mxu0 0
    %568 = vmatprep.subr.bf16.mxu0 0
    %569 = vmatpush1.bf16.msra.mxu0 0
    %570 = vmatprep.subr.bf16.mxu0 0
    %571 = vmatpush1.bf16.msra.mxu0 0
    %572 = vmatprep.subr.bf16.mxu0 0
    %573 = vmatpush1.bf16.msra.mxu0 0
    %574 = vmatprep.subr.bf16.mxu0 0
    %575 = vmatpush1.bf16.msra.mxu0 0
    %576 = vmatprep.mubr.bf16.mxu0 0
    %577 = vmatmul.mubr.bf16.gmra.mrb[0].mxu0 %v400
    %v578 = vpop.f32.mrb[0].mxu0
    %v579 = vadd.f32 0.0, %v578
    %v580 = vpop.f32.mrb[0].mxu0
    %v581 = vadd.f32 0.0, %v580
    %v582 = vpop.f32.mrb[0].mxu0
    %v583 = vadd.f32 0.0, %v582
    %v584 = vpop.f32.mrb[0].mxu0
    %v585 = vadd.f32 0.0, %v584
    %586 = vdwg.mxu0
    %587 = vmatprep.subr.bf16.mxu0 %v531
    %588 = vmatpush1.bf16.msra.mxu0 %v530
    %589 = vmatprep.subr.bf16.mxu0 %v535
    %590 = vmatpush1.bf16.msra.mxu0 %v534
    %591 = vmatprep.subr.bf16.mxu0 0
    %592 = vmatpush1.bf16.msra.mxu0 0
    %593 = vmatprep.subr.bf16.mxu0 0
    %594 = vmatpush1.bf16.msra.mxu0 0
    %595 = vmatprep.subr.bf16.mxu0 0
    %596 = vmatpush1.bf16.msra.mxu0 0
    %597 = vmatprep.subr.bf16.mxu0 0
    %598 = vmatpush1.bf16.msra.mxu0 0
    %599 = vmatprep.subr.bf16.mxu0 0
    %600 = vmatpush1.bf16.msra.mxu0 0
    %601 = vmatprep.subr.bf16.mxu0 0
    %602 = vmatpush1.bf16.msra.mxu0 0
    %603 = vmatprep.subr.bf16.mxu0 0
    %604 = vmatpush1.bf16.msra.mxu0 0
    %605 = vmatprep.subr.bf16.mxu0 0
    %606 = vmatpush1.bf16.msra.mxu0 0
    %607 = vmatprep.subr.bf16.mxu0 0
    %608 = vmatpush1.bf16.msra.mxu0 0
    %609 = vmatprep.subr.bf16.mxu0 0
    %610 = vmatpush1.bf16.msra.mxu0 0
    %611 = vmatprep.subr.bf16.mxu0 0
    %612 = vmatpush1.bf16.msra.mxu0 0
    %613 = vmatprep.subr.bf16.mxu0 0
    %614 = vmatpush1.bf16.msra.mxu0 0
    %615 = vmatprep.subr.bf16.mxu0 0
    %616 = vmatpush1.bf16.msra.mxu0 0
    %617 = vmatprep.subr.bf16.mxu0 0
    %618 = vmatpush1.bf16.msra.mxu0 0
    %619 = vmatprep.mubr.bf16.mxu0 0
    %620 = vmatmul.mubr.bf16.gmra.mrb[0].mxu0 %v400
    %v621 = vpop.f32.mrb[0].mxu0
    %v622 = vadd.f32 0.0, %v621
    %v623 = vpop.f32.mrb[0].mxu0
    %v624 = vadd.f32 0.0, %v623
    %v625 = vpop.f32.mrb[0].mxu0
    %v626 = vadd.f32 0.0, %v625
    %v627 = vpop.f32.mrb[0].mxu0
    %v628 = vadd.f32 0.0, %v627
    %629 = vdwg.mxu0
    %630 = vst [vmem:[#allocation7 + $0x20] sm:$0xff] %v579
    %631 = vst [vmem:[#allocation7 + $0x28] sm:$0xff] %v581
    %632 = vst [vmem:[#allocation7 + $0x30] sm:$0xff] %v622
    %633 = vst [vmem:[#allocation7 + $0x38] sm:$0xff] %v624
    %634 = vst [vmem:[#allocation7 + $0x60] sm:$0xff] %v583
    %635 = vst [vmem:[#allocation7 + $0x68] sm:$0xff] %v585
    %636 = vst [vmem:[#allocation7 + $0x70] sm:$0xff] %v626
    %637 = vst [vmem:[#allocation7 + $0x78] sm:$0xff] %v628
    // Predicated region
    $region18: #{tpu_custom_call.1} parent=1 // pred_check
      _
    $region19: #{tpu_custom_call.1} parent=1 // pred_check_branch
      %639 = sbr.rel (0) target = $region21
    $region20: #{tpu_custom_call.1} parent=1 // pred_region
      %s641 = ssub.s32 2048, 2048
      %642 = vsyncadd [#allocation4], %s641
      %s643 = sshll.u32 [#allocation7], 4
      %s644 = int_to_ptr.vmem [resolvable:$true] %s643
      %649 = dma.vmem_to_hbm [thread:$0]  %s644, 2048, %s2, [#allocation4], 1024, 1024, 64
    $region21: #{tpu_custom_call.1} parent=1 // pred_fallthru
      _
    // Predicated region
    $region22: #{tpu_custom_call.1} parent=1 // pred_check
      _
    $region23: #{tpu_custom_call.1} parent=1 // pred_check_branch
      %651 = sbr.rel (0) target = $region25
    $region24: #{tpu_custom_call.1} parent=1 // pred_region
      %652 = dma.done [#allocation4], 2048
    $region25: #{tpu_custom_call.1} parent=1 // pred_fallthru
      _
    %653 = vsyncpa [#allocation3], 1
    %654 = vsyncpa [#allocation6], 1
    %655 = vsyncpa [#allocation4], 1

</llo_original>
